<compile_context>
chip_gen: v7x
topology: tpu7x:2x2x1
jax: 0.10.0
libtpu: 0.0.40
codegen_flags: <defaults>
</compile_context>

<pallas_src>
import functools

import jax
import jax.numpy as jnp
from jax import lax
from jax.experimental import pallas as pl
from jax.experimental.pallas import tpu as pltpu


def _round_up(v, m):
    return ((v + m - 1) // m) * m


def mlp_kernel(x_ref, w1_ref, b1_ref, w2_ref, b2_ref, w3_ref, b3_ref, oT_ref):
    # x_ref : [bm, in_dim]   f32  (raw batch-major input; cast fused here)
    # w*    : [out, in]      bf16 (PyTorch layout)
    # b*    : [out, 1]       f32  (feature-major columns)
    # oT_ref: [out_dim, bm]  bf16 (feature-major -> lane-dense stores)
    xb = x_ref[...].astype(jnp.bfloat16)

    # Layer 1: contract on in_dim -> feature-major [128, bm]; the MXU handles
    # the x reorientation (no wrapper transpose pass).
    h1 = lax.dot_general(w1_ref[...], xb, (((1,), (1,)), ((), ())),
                         preferred_element_type=jnp.float32)
    h1 = jnp.maximum(h1 + b1_ref[...], 0.0).astype(jnp.bfloat16)

    # Layer 2: [64, 128] @ [128, bm] -> [64, bm]
    h2 = jnp.dot(w2_ref[...], h1, preferred_element_type=jnp.float32)
    h2 = jnp.maximum(h2 + b2_ref[...], 0.0).astype(jnp.bfloat16)

    # Layer 3: [16, 64] @ [64, bm] -> [16, bm]; last dim = bm -> dense vst.
    out = jnp.dot(w3_ref[...], h2, preferred_element_type=jnp.float32) + b3_ref[...]
    oT_ref[...] = out.astype(oT_ref.dtype)


def sequence_mlp(x, params, *, bm=8192):
    """x: [B, input_dim] float32. Returns [B, output_dim] float32."""
    w1, b1 = params["w1"], params["b1"]
    w2, b2 = params["w2"], params["b2"]
    w3, b3 = params["w3"], params["b3"]
    B, in_dim = x.shape
    h1_dim, h2_dim, out_dim = w1.shape[0], w2.shape[0], w3.shape[0]

    # Batch tile: multiple of 128 (lane width). If B < 2*bm, shrink the tile so
    # the grid has >= 2 steps (even split across v7x's 2 TensorCores).
    bm = max(128, min(bm, _round_up(pl.cdiv(B, 2), 128)))
    Bp = _round_up(B, bm)
    xp = x if Bp == B else jnp.pad(x, ((0, Bp - B), (0, 0)))
    grid = (Bp // bm,)

    # Grid-invariant full blocks for params (no re-DMA across grid steps).
    full = lambda a: pl.BlockSpec(a.shape, lambda i, _nd=a.ndim: (0,) * _nd)

    # Scoped-VMEM budget from actual buffer sizes: double-buffered x/out tiles
    # (x lane-padded to 128), f32+bf16 intermediates, params + headroom.
    lane = 128
    vmem_bytes = (
        2 * bm * _round_up(in_dim, lane) * 4          # x tiles, f32
        + 2 * _round_up(out_dim, 8) * bm * 2          # out tiles, bf16
        + bm * (h1_dim * 6 + h2_dim * 6 + _round_up(in_dim, lane) * 2)  # temps
        + 4 * 1024 * 1024                             # params + margin
    )
    vmem_bytes = int(min(vmem_bytes, 64 * 1024 * 1024))

    param_bytes = sum(int(a.size) * a.dtype.itemsize
                      for a in (w1, b1, w2, b2, w3, b3))
    cost = pl.CostEstimate(
        flops=2 * Bp * (in_dim * h1_dim + h1_dim * h2_dim + h2_dim * out_dim),
        transcendentals=0,
        bytes_accessed=Bp * (in_dim * 4 + out_dim * 2) + param_bytes,
    )

    yT = pl.pallas_call(
        mlp_kernel,
        out_shape=jax.ShapeDtypeStruct((out_dim, Bp), jnp.bfloat16),
        grid_spec=pltpu.PrefetchScalarGridSpec(
            num_scalar_prefetch=0,
            grid=grid,
            in_specs=[
                pl.BlockSpec((bm, in_dim), lambda i: (i, 0)),   # batch-major x tile
                full(w1), full(b1),
                full(w2), full(b2),
                full(w3), full(b3),
            ],
            out_specs=pl.BlockSpec((out_dim, bm), lambda i: (0, i)),
        ),
        compiler_params=pltpu.CompilerParams(
            dimension_semantics=("parallel",),      # shard grid over v7x's 2 TCs
            vmem_limit_bytes=vmem_bytes,
        ),
        cost_estimate=cost,
    )(xp, w1, b1, w2, b2, w3, b3)

    # Tiny (out_dim-wide) transpose/upcast; feature-major bf16 consumers can
    # take yT directly and skip this pass entirely.
    return yT.T[:B].astype(jnp.float32)


def init_params(key, input_dim, output_dim):
    """PyTorch nn.Linear-style init. Weights [out, in] bf16; biases [out, 1] f32."""
    ks = jax.random.split(key, 6)

    def lin(kw, kb, fan_in, fan_out):
        bound = 1.0 / jnp.sqrt(fan_in)
        w = jax.random.uniform(kw, (fan_out, fan_in), jnp.float32, -bound, bound)
        b = jax.random.uniform(kb, (fan_out, 1), jnp.float32, -bound, bound)
        return w.astype(jnp.bfloat16), b

    w1, b1 = lin(ks[0], ks[1], input_dim, 128)
    w2, b2 = lin(ks[2], ks[3], 128, 64)
    w3, b3 = lin(ks[4], ks[5], 64, output_dim)
    return {"w1": w1, "b1": b1, "w2": w2, "b2": b2, "w3": w3, "b3": b3}


def mlp_ref(x, p):
    w1 = p["w1"].astype(jnp.float32)
    w2 = p["w2"].astype(jnp.float32)
    w3 = p["w3"].astype(jnp.float32)
    h1 = jnp.maximum(x @ w1.T + p["b1"].T, 0.0)
    h2 = jnp.maximum(h1 @ w2.T + p["b2"].T, 0.0)
    return h2 @ w3.T + p["b3"].T


if __name__ == "__main__":
    key = jax.random.PRNGKey(0)
    k_x, k_p = jax.random.split(key)

    batch, input_dim, output_dim = 256, 32, 16
    x = jax.random.normal(k_x, (batch, input_dim), jnp.float32)
    params = init_params(k_p, input_dim, output_dim)

    # The requested bm=8192 shrinks to 128 here (B=256), so the demo grid has
    # 2 steps: exercises pipelining and the 2-TensorCore split.
    fwd = jax.jit(functools.partial(sequence_mlp, bm=8192))
    out = jax.block_until_ready(fwd(x, params))

    # Reference sees the same bf16-rounded input/weights the kernel consumes.
    ref = mlp_ref(x.astype(jnp.bfloat16).astype(jnp.float32), params)
    assert out.shape == (batch, output_dim)
    assert jnp.allclose(out, ref, atol=3e-2, rtol=3e-2), float(
        jnp.max(jnp.abs(out - ref)))

    print("KERNEL_OK")
</pallas_src>

<mosaic_0001>
module attributes {stable_mosaic.version = 11 : i64} {
  func.func @mlp_kernel(%arg0: i32, %arg1: memref<128x32xf32, #tpu.memory_space<vmem>>, %arg2: memref<128x32xbf16, #tpu.memory_space<vmem>>, %arg3: memref<128x1xf32, #tpu.memory_space<vmem>>, %arg4: memref<64x128xbf16, #tpu.memory_space<vmem>>, %arg5: memref<64x1xf32, #tpu.memory_space<vmem>>, %arg6: memref<16x64xbf16, #tpu.memory_space<vmem>>, %arg7: memref<16x1xf32, #tpu.memory_space<vmem>>, %arg8: memref<16x128xbf16, #tpu.memory_space<vmem>>) attributes {dimension_semantics = [#tpu.dimension_semantics<parallel>], iteration_bounds = array<i64: 2>, scalar_prefetch = 0 : i64, scratch_operands = 0 : i64, tpu.core_type = #tpu.core_type<tc>, window_params = [{transform_indices = @transform_0, window_bounds = array<i64: 128, 32>}, {pipeline_mode = #tpu.pipeline_mode<synchronous>, transform_indices = @transform_1, window_bounds = array<i64: 128, 32>}, {pipeline_mode = #tpu.pipeline_mode<synchronous>, transform_indices = @transform_2, window_bounds = array<i64: 128, 1>}, {pipeline_mode = #tpu.pipeline_mode<synchronous>, transform_indices = @transform_3, window_bounds = array<i64: 64, 128>}, {pipeline_mode = #tpu.pipeline_mode<synchronous>, transform_indices = @transform_4, window_bounds = array<i64: 64, 1>}, {pipeline_mode = #tpu.pipeline_mode<synchronous>, transform_indices = @transform_5, window_bounds = array<i64: 16, 64>}, {pipeline_mode = #tpu.pipeline_mode<synchronous>, transform_indices = @transform_6, window_bounds = array<i64: 16, 1>}, {transform_indices = @transform_7, window_bounds = array<i64: 16, 128>}]} {
    %c0 = arith.constant 0 : index
    %c0_0 = arith.constant 0 : index
    %0 = vector.load %arg1[%c0, %c0_0] : memref<128x32xf32, #tpu.memory_space<vmem>>, vector<128x32xf32>
    %1 = arith.truncf %0 : vector<128x32xf32> to vector<128x32xbf16>
    %c0_1 = arith.constant 0 : index
    %c0_2 = arith.constant 0 : index
    %2 = vector.load %arg2[%c0_1, %c0_2] : memref<128x32xbf16, #tpu.memory_space<vmem>>, vector<128x32xbf16>
    %cst = arith.constant dense<0.000000e+00> : vector<128x128xf32>
    %3 = tpu.matmul %2, %1, %cst {dimension_numbers = #tpu.dot_dimension_numbers<[1], [1], [0], [0], [0, 0, 1, 0], [], []>} : vector<128x32xbf16>, vector<128x32xbf16>, vector<128x128xf32> -> vector<128x128xf32>
    %c0_3 = arith.constant 0 : index
    %c0_4 = arith.constant 0 : index
    %4 = vector.load %arg3[%c0_3, %c0_4] : memref<128x1xf32, #tpu.memory_space<vmem>>, vector<128x1xf32>
    %5 = vector.broadcast %4 : vector<128x1xf32> to vector<128x128xf32>
    %6 = arith.addf %3, %5 : vector<128x128xf32>
    %cst_5 = arith.constant 0.000000e+00 : f32
    %7 = vector.broadcast %cst_5 : f32 to vector<128x128xf32>
    %8 = arith.maximumf %6, %7 : vector<128x128xf32>
    %9 = arith.truncf %8 : vector<128x128xf32> to vector<128x128xbf16>
    %c0_6 = arith.constant 0 : index
    %c0_7 = arith.constant 0 : index
    %10 = vector.load %arg4[%c0_6, %c0_7] : memref<64x128xbf16, #tpu.memory_space<vmem>>, vector<64x128xbf16>
    %cst_8 = arith.constant dense<0.000000e+00> : vector<64x128xf32>
    %11 = tpu.matmul %10, %9, %cst_8 {dimension_numbers = #tpu.dot_dimension_numbers<[1], [0], [0], [1], [0, 0, 1, 1], [], []>} : vector<64x128xbf16>, vector<128x128xbf16>, vector<64x128xf32> -> vector<64x128xf32>
    %c0_9 = arith.constant 0 : index
    %c0_10 = arith.constant 0 : index
    %12 = vector.load %arg5[%c0_9, %c0_10] : memref<64x1xf32, #tpu.memory_space<vmem>>, vector<64x1xf32>
    %13 = vector.broadcast %12 : vector<64x1xf32> to vector<64x128xf32>
    %14 = arith.addf %11, %13 : vector<64x128xf32>
    %cst_11 = arith.constant 0.000000e+00 : f32
    %15 = vector.broadcast %cst_11 : f32 to vector<64x128xf32>
    %16 = arith.maximumf %14, %15 : vector<64x128xf32>
    %17 = arith.truncf %16 : vector<64x128xf32> to vector<64x128xbf16>
    %c0_12 = arith.constant 0 : index
    %c0_13 = arith.constant 0 : index
    %18 = vector.load %arg6[%c0_12, %c0_13] : memref<16x64xbf16, #tpu.memory_space<vmem>>, vector<16x64xbf16>
    %cst_14 = arith.constant dense<0.000000e+00> : vector<16x128xf32>
    %19 = tpu.matmul %18, %17, %cst_14 {dimension_numbers = #tpu.dot_dimension_numbers<[1], [0], [0], [1], [0, 0, 1, 1], [], []>} : vector<16x64xbf16>, vector<64x128xbf16>, vector<16x128xf32> -> vector<16x128xf32>
    %c0_15 = arith.constant 0 : index
    %c0_16 = arith.constant 0 : index
    %20 = vector.load %arg7[%c0_15, %c0_16] : memref<16x1xf32, #tpu.memory_space<vmem>>, vector<16x1xf32>
    %21 = vector.broadcast %20 : vector<16x1xf32> to vector<16x128xf32>
    %22 = arith.addf %19, %21 : vector<16x128xf32>
    %23 = arith.truncf %22 : vector<16x128xf32> to vector<16x128xbf16>
    %c0_17 = arith.constant 0 : index
    %c0_18 = arith.constant 0 : index
    %24 = vector.load %arg8[%c0_17, %c0_18] : memref<16x128xbf16, #tpu.memory_space<vmem>>, vector<16x128xbf16>
    tpu.vector_store %arg8[%c0_17, %c0_18], %23 {strides = array<i32>} : memref<16x128xbf16, #tpu.memory_space<vmem>>, vector<16x128xbf16>,
    return
  }
  func.func @transform_0(%arg0: i32) -> (i32, i32) {
    %c0_i32 = arith.constant 0 : i32
    %c0_i32_0 = arith.constant 0 : i32
    return %arg0, %c0_i32 : i32, i32
  }
  func.func @transform_1(%arg0: i32) -> (i32, i32) {
    %c0_i32 = arith.constant 0 : i32
    %c0_i32_0 = arith.constant 0 : i32
    %c0_i32_1 = arith.constant 0 : i32
    return %c0_i32, %c0_i32_0 : i32, i32
  }
  func.func @transform_2(%arg0: i32) -> (i32, i32) {
    %c0_i32 = arith.constant 0 : i32
    %c0_i32_0 = arith.constant 0 : i32
    %c0_i32_1 = arith.constant 0 : i32
    return %c0_i32, %c0_i32_0 : i32, i32
  }
  func.func @transform_3(%arg0: i32) -> (i32, i32) {
    %c0_i32 = arith.constant 0 : i32
    %c0_i32_0 = arith.constant 0 : i32
    %c0_i32_1 = arith.constant 0 : i32
    return %c0_i32, %c0_i32_0 : i32, i32
  }
  func.func @transform_4(%arg0: i32) -> (i32, i32) {
    %c0_i32 = arith.constant 0 : i32
    %c0_i32_0 = arith.constant 0 : i32
    %c0_i32_1 = arith.constant 0 : i32
    return %c0_i32, %c0_i32_0 : i32, i32
  }
  func.func @transform_5(%arg0: i32) -> (i32, i32) {
    %c0_i32 = arith.constant 0 : i32
    %c0_i32_0 = arith.constant 0 : i32
    %c0_i32_1 = arith.constant 0 : i32
    return %c0_i32, %c0_i32_0 : i32, i32
  }
  func.func @transform_6(%arg0: i32) -> (i32, i32) {
    %c0_i32 = arith.constant 0 : i32
    %c0_i32_0 = arith.constant 0 : i32
    %c0_i32_1 = arith.constant 0 : i32
    return %c0_i32, %c0_i32_0 : i32, i32
  }
  func.func @transform_7(%arg0: i32) -> (i32, i32) {
    %c0_i32 = arith.constant 0 : i32
    %c0_i32_0 = arith.constant 0 : i32
    return %c0_i32, %arg0 : i32, i32
  }
}

</mosaic_0001>

<llo_original>
// kernel: sequence_mlp.1
$region0: #{sequence_mlp.1}
  #allocation0 [shape = 'u32[]', space=smem, size = 0x4, offset = 0x4, fixed_abs, tag = 'smem constant byte address 0x4 - core index']
  #allocation1 [shape = 'u32[144,128]{1,0:T(1,128)}', space=vmem, size = 0x12000, scoped, tag = 'internal scratch']
  %s0 = inlined_call_operand.vmem [shape: f32[256,32], index: 0, kind: input, shape index: {}]
  %s1 = inlined_call_operand.vmem [shape: bf16[128,32], index: 1, kind: input, shape index: {}]
  %s2 = inlined_call_operand.vmem [shape: f32[128,1], index: 2, kind: input, shape index: {}]
  %s3 = inlined_call_operand.vmem [shape: bf16[64,128], index: 3, kind: input, shape index: {}]
  %s4 = inlined_call_operand.vmem [shape: f32[64,1], index: 4, kind: input, shape index: {}]
  %s5 = inlined_call_operand.vmem [shape: bf16[16,64], index: 5, kind: input, shape index: {}]
  %s6 = inlined_call_operand.vmem [shape: f32[16,1], index: 6, kind: input, shape index: {}]
  %s7 = inlined_call_operand.vmem [shape: bf16[16,256], index: 7, kind: output, shape index: {}]
  %s8 = sld [smem:[#allocation0]]
  $region98: #{sequence_mlp.1} parent=0
    _
  %s10 = ssub.s32 1, %s8
  %s11 = scalar_select 0, %s10, %s8
  $region1: #{sequence_mlp.1} parent=0
    #allocation2 [shape = 'u8[8192]{0}', space=vmem, size = 0x2000, scoped, tag = 'output window, operand 0']
    loop: start=0, step=1, limit=4
    $region2: #{sequence_mlp.1} parent=1 // loop_pre_header
      _
    $region3: #{sequence_mlp.1} parent=1 // loop_header
      %s13 = sphi 0, %s17
      %p14 = scmp.ge.s32.totalorder %s13, 4
      %s23 = sphi 0, %s25
      %s26 = sphi 0, %s23
      %s27 = sphi 0, %s26
      %s43 = sphi 0, %s27
      %s47 = sphi 0, %s47
      %s49 = sphi 0, %s47
      %s50 = sphi 0, %s49
      %s64 = sphi 0, %s50
      %s68 = sphi 0, %s68
      %s70 = sphi 0, %s68
      %s71 = sphi 0, %s70
      %s85 = sphi 0, %s71
      %s89 = sphi 0, %s89
      %s91 = sphi 0, %s89
      %s92 = sphi 0, %s91
      %s106 = sphi 0, %s92
      %s110 = sphi 0, %s110
      %s112 = sphi 0, %s110
      %s113 = sphi 0, %s112
      %s127 = sphi 0, %s113
      %s131 = sphi 0, %s131
      %s133 = sphi 0, %s131
      %s134 = sphi 0, %s133
      %s148 = sphi 0, %s134
      %s152 = sphi 0, %s152
      %s154 = sphi 0, %s152
      %s155 = sphi 0, %s154
      %s169 = sphi 0, %s155
      %s175 = sphi 0, %s177
      %s178 = sphi 0, %s175
      %s179 = sphi 0, %s178
      %s195 = sphi 0, %s179
    $region4: #{sequence_mlp.1} parent=1 // loop_header_branch
      %16 = sbr.rel (%p14) target = $region8
    $region5: #{sequence_mlp.1} parent=1 // loop_body
      %s18 = ssub.s32 %s13, 1
      %s19 = ssub.s32 %s13, 2
      %s20 = sadd.s32 %s13, 1
      %s21 = ssub.s32 %s13, %s20
      %p22 = scmp.eq.s32.totalorder %s21, 0
      %s24 = sadd.s32 %s23, 1
      %s25 = scalar_select %p22, %s23, %s24
      %p28 = pneg %p22
      %p29 = scmp.eq.s32.totalorder %s13, 1
      %p30 = por %p28, %p29
      %p31 = scmp.ne.s32.totalorder %s23, %s26
      %p32 = scmp.eq.s32.totalorder %s13, 0
      %p33 = por %p31, %p32
      %p34 = scmp.ne.s32.totalorder %s23, %s26
      %p35 = scmp.eq.s32.totalorder %s18, 1
      %p36 = por %p34, %p35
      %p37 = scmp.ne.s32.totalorder %s26, %s27
      %p38 = scmp.eq.s32.totalorder %s18, 0
      %p39 = por %p37, %p38
      %p40 = scmp.ne.s32.totalorder %s26, %s27
      %p41 = scmp.eq.s32.totalorder %s19, 1
      %p42 = por %p40, %p41
      %p44 = scmp.ne.s32.totalorder %s27, %s43
      %p45 = scmp.eq.s32.totalorder %s19, 0
      %p46 = por %p44, %p45
      %s48 = sadd.s32 %s47, 1
      %p51 = scmp.eq.s32.totalorder %s13, 1
      %p52 = scmp.ne.s32.totalorder %s47, %s49
      %p53 = scmp.eq.s32.totalorder %s13, 0
      %p54 = por %p52, %p53
      %p55 = scmp.ne.s32.totalorder %s47, %s49
      %p56 = scmp.eq.s32.totalorder %s18, 1
      %p57 = por %p55, %p56
      %p58 = scmp.ne.s32.totalorder %s49, %s50
      %p59 = scmp.eq.s32.totalorder %s18, 0
      %p60 = por %p58, %p59
      %p61 = scmp.ne.s32.totalorder %s49, %s50
      %p62 = scmp.eq.s32.totalorder %s19, 1
      %p63 = por %p61, %p62
      %p65 = scmp.ne.s32.totalorder %s50, %s64
      %p66 = scmp.eq.s32.totalorder %s19, 0
      %p67 = por %p65, %p66
      %s69 = sadd.s32 %s68, 1
      %p72 = scmp.eq.s32.totalorder %s13, 1
      %p73 = scmp.ne.s32.totalorder %s68, %s70
      %p74 = scmp.eq.s32.totalorder %s13, 0
      %p75 = por %p73, %p74
      %p76 = scmp.ne.s32.totalorder %s68, %s70
      %p77 = scmp.eq.s32.totalorder %s18, 1
      %p78 = por %p76, %p77
      %p79 = scmp.ne.s32.totalorder %s70, %s71
      %p80 = scmp.eq.s32.totalorder %s18, 0
      %p81 = por %p79, %p80
      %p82 = scmp.ne.s32.totalorder %s70, %s71
      %p83 = scmp.eq.s32.totalorder %s19, 1
      %p84 = por %p82, %p83
      %p86 = scmp.ne.s32.totalorder %s71, %s85
      %p87 = scmp.eq.s32.totalorder %s19, 0
      %p88 = por %p86, %p87
      %s90 = sadd.s32 %s89, 1
      %p93 = scmp.eq.s32.totalorder %s13, 1
      %p94 = scmp.ne.s32.totalorder %s89, %s91
      %p95 = scmp.eq.s32.totalorder %s13, 0
      %p96 = por %p94, %p95
      %p97 = scmp.ne.s32.totalorder %s89, %s91
      %p98 = scmp.eq.s32.totalorder %s18, 1
      %p99 = por %p97, %p98
      %p100 = scmp.ne.s32.totalorder %s91, %s92
      %p101 = scmp.eq.s32.totalorder %s18, 0
      %p102 = por %p100, %p101
      %p103 = scmp.ne.s32.totalorder %s91, %s92
      %p104 = scmp.eq.s32.totalorder %s19, 1
      %p105 = por %p103, %p104
      %p107 = scmp.ne.s32.totalorder %s92, %s106
      %p108 = scmp.eq.s32.totalorder %s19, 0
      %p109 = por %p107, %p108
      %s111 = sadd.s32 %s110, 1
      %p114 = scmp.eq.s32.totalorder %s13, 1
      %p115 = scmp.ne.s32.totalorder %s110, %s112
      %p116 = scmp.eq.s32.totalorder %s13, 0
      %p117 = por %p115, %p116
      %p118 = scmp.ne.s32.totalorder %s110, %s112
      %p119 = scmp.eq.s32.totalorder %s18, 1
      %p120 = por %p118, %p119
      %p121 = scmp.ne.s32.totalorder %s112, %s113
      %p122 = scmp.eq.s32.totalorder %s18, 0
      %p123 = por %p121, %p122
      %p124 = scmp.ne.s32.totalorder %s112, %s113
      %p125 = scmp.eq.s32.totalorder %s19, 1
      %p126 = por %p124, %p125
      %p128 = scmp.ne.s32.totalorder %s113, %s127
      %p129 = scmp.eq.s32.totalorder %s19, 0
      %p130 = por %p128, %p129
      %s132 = sadd.s32 %s131, 1
      %p135 = scmp.eq.s32.totalorder %s13, 1
      %p136 = scmp.ne.s32.totalorder %s131, %s133
      %p137 = scmp.eq.s32.totalorder %s13, 0
      %p138 = por %p136, %p137
      %p139 = scmp.ne.s32.totalorder %s131, %s133
      %p140 = scmp.eq.s32.totalorder %s18, 1
      %p141 = por %p139, %p140
      %p142 = scmp.ne.s32.totalorder %s133, %s134
      %p143 = scmp.eq.s32.totalorder %s18, 0
      %p144 = por %p142, %p143
      %p145 = scmp.ne.s32.totalorder %s133, %s134
      %p146 = scmp.eq.s32.totalorder %s19, 1
      %p147 = por %p145, %p146
      %p149 = scmp.ne.s32.totalorder %s134, %s148
      %p150 = scmp.eq.s32.totalorder %s19, 0
      %p151 = por %p149, %p150
      %s153 = sadd.s32 %s152, 1
      %p156 = scmp.eq.s32.totalorder %s13, 1
      %p157 = scmp.ne.s32.totalorder %s152, %s154
      %p158 = scmp.eq.s32.totalorder %s13, 0
      %p159 = por %p157, %p158
      %p160 = scmp.ne.s32.totalorder %s152, %s154
      %p161 = scmp.eq.s32.totalorder %s18, 1
      %p162 = por %p160, %p161
      %p163 = scmp.ne.s32.totalorder %s154, %s155
      %p164 = scmp.eq.s32.totalorder %s18, 0
      %p165 = por %p163, %p164
      %p166 = scmp.ne.s32.totalorder %s154, %s155
      %p167 = scmp.eq.s32.totalorder %s19, 1
      %p168 = por %p166, %p167
      %p170 = scmp.ne.s32.totalorder %s155, %s169
      %p171 = scmp.eq.s32.totalorder %s19, 0
      %p172 = por %p170, %p171
      %s173 = ssub.s32 %s13, %s20
      %p174 = scmp.eq.s32.totalorder %s173, 0
      %s176 = sadd.s32 %s175, 1
      %s177 = scalar_select %p174, %s175, %s176
      %p180 = pneg %p174
      %p181 = scmp.eq.s32.totalorder %s13, 1
      %p182 = por %p180, %p181
      %p183 = scmp.ne.s32.totalorder %s175, %s178
      %p184 = scmp.eq.s32.totalorder %s13, 0
      %p185 = por %p183, %p184
      %p186 = scmp.ne.s32.totalorder %s175, %s178
      %p187 = scmp.eq.s32.totalorder %s18, 1
      %p188 = por %p186, %p187
      %p189 = scmp.ne.s32.totalorder %s178, %s179
      %p190 = scmp.eq.s32.totalorder %s18, 0
      %p191 = por %p189, %p190
      %p192 = scmp.ne.s32.totalorder %s178, %s179
      %p193 = scmp.eq.s32.totalorder %s19, 1
      %p194 = por %p192, %p193
      %p196 = scmp.ne.s32.totalorder %s179, %s195
      %p197 = scmp.eq.s32.totalorder %s19, 0
      %p198 = por %p196, %p197
      %p199 = scmp.le.s32.totalorder 1, %s13
      %p200 = scmp.lt.s32.totalorder %s13, 3
      %p201 = pnand %p199, %p200
      %p202 = pneg %p201
      // Predicated region
      $region9: #{sequence_mlp.1} parent=5 // pred_check
        _
      $region10: #{sequence_mlp.1} parent=5 // pred_check_branch
        %204 = sbr.rel (%p201) target = $region12
      $region11: #{sequence_mlp.1} parent=5 // pred_region
        %s205 = ssub.s32 %s13, 1
        // Predicated region
        $region13: #{sequence_mlp.1} parent=11 // pred_check
          %p206 = pneg %p60
        $region14: #{sequence_mlp.1} parent=11 // pred_check_branch
          %208 = sbr.rel (%p206) target = $region16
        $region15: #{sequence_mlp.1} parent=11 // pred_region
          _
        $region16: #{sequence_mlp.1} parent=11 // pred_fallthru
          _
        // Predicated region
        $region17: #{sequence_mlp.1} parent=11 // pred_check
          %p209 = pneg %p81
        $region18: #{sequence_mlp.1} parent=11 // pred_check_branch
          %211 = sbr.rel (%p209) target = $region20
        $region19: #{sequence_mlp.1} parent=11 // pred_region
          _
        $region20: #{sequence_mlp.1} parent=11 // pred_fallthru
          _
        // Predicated region
        $region21: #{sequence_mlp.1} parent=11 // pred_check
          %p212 = pneg %p102
        $region22: #{sequence_mlp.1} parent=11 // pred_check_branch
          %214 = sbr.rel (%p212) target = $region24
        $region23: #{sequence_mlp.1} parent=11 // pred_region
          _
        $region24: #{sequence_mlp.1} parent=11 // pred_fallthru
          _
        // Predicated region
        $region25: #{sequence_mlp.1} parent=11 // pred_check
          %p215 = pneg %p123
        $region26: #{sequence_mlp.1} parent=11 // pred_check_branch
          %217 = sbr.rel (%p215) target = $region28
        $region27: #{sequence_mlp.1} parent=11 // pred_region
          _
        $region28: #{sequence_mlp.1} parent=11 // pred_fallthru
          _
        // Predicated region
        $region29: #{sequence_mlp.1} parent=11 // pred_check
          %p218 = pneg %p144
        $region30: #{sequence_mlp.1} parent=11 // pred_check_branch
          %220 = sbr.rel (%p218) target = $region32
        $region31: #{sequence_mlp.1} parent=11 // pred_region
          _
        $region32: #{sequence_mlp.1} parent=11 // pred_fallthru
          _
        // Predicated region
        $region33: #{sequence_mlp.1} parent=11 // pred_check
          %p221 = pneg %p165
        $region34: #{sequence_mlp.1} parent=11 // pred_check_branch
          %223 = sbr.rel (%p221) target = $region36
        $region35: #{sequence_mlp.1} parent=11 // pred_region
          _
        $region36: #{sequence_mlp.1} parent=11 // pred_fallthru
          _
      $region12: #{sequence_mlp.1} parent=5 // pred_fallthru
        _
      %p224 = scmp.lt.s32.totalorder %s13, 2
      // Predicated region
      $region37: #{sequence_mlp.1} parent=5 // pred_check
        %p225 = pneg %p224
      $region38: #{sequence_mlp.1} parent=5 // pred_check_branch
        %227 = sbr.rel (%p225) target = $region40
      $region39: #{sequence_mlp.1} parent=5 // pred_region
        // Predicated region
        $region41: #{sequence_mlp.1} parent=39 // pred_check
          %p228 = pneg %p33
        $region42: #{sequence_mlp.1} parent=39 // pred_check_branch
          %230 = sbr.rel (%p228) target = $region44
        $region43: #{sequence_mlp.1} parent=39 // pred_region
          %s231 = smul.u32 16, %s13
          %p232 = scmp.lt.s32.totalorder %s231, 31
          %s233 = scalar_select %p232, %s231, 31
          %s234 = smul.addr %s233, 8
          %s235 = scalar_lea.vmem %s0, %s234
          %s236 = smul.u32 16, %s13
        $region44: #{sequence_mlp.1} parent=39 // pred_fallthru
          _
      $region40: #{sequence_mlp.1} parent=5 // pred_fallthru
        _
      %p237 = scmp.le.s32.totalorder 1, %s13
      %p238 = scmp.lt.s32.totalorder %s13, 3
      %p239 = pnand %p237, %p238
      %p240 = pneg %p239
      // Predicated region
      $region45: #{sequence_mlp.1} parent=5 // pred_check
        _
      $region46: #{sequence_mlp.1} parent=5 // pred_check_branch
        %242 = sbr.rel (%p239) target = $region48
      $region47: #{sequence_mlp.1} parent=5 // pred_region
        %s243 = ssub.s32 %s13, 1
        %s244 = smul.u32 16, %s18
        %p245 = scmp.lt.s32.totalorder %s244, 31
        %s246 = scalar_select %p245, %s244, 31
        %s247 = smul.addr %s246, 8
        %s248 = scalar_lea.vmem %s0, %s247
        %p249 = pneg %p39
        %p250 = pneg %p36
        %p251 = pneg %p60
        %p252 = pneg %p57
        %p253 = pneg %p81
        %p254 = pneg %p78
        %p255 = pneg %p102
        %p256 = pneg %p99
        %p257 = pneg %p123
        %p258 = pneg %p120
        %p259 = pneg %p144
        %p260 = pneg %p141
        %p261 = pneg %p165
        %p262 = pneg %p162
        %p263 = pneg %p191
        %p264 = pneg %p188
        %s265 = sand.u32 %s178, 1
        %s266 = sand.u32 %s178, 1
        %s267 = smul.addr %s266, 8
        %s268 = scalar_lea.vmem [#allocation2], %s267
        %s269 = smul.u32 16, %s18
        %p270 = scmp.lt.s32.totalorder %s269, 31
        %s271 = scalar_select %p270, %s269, 31
        %s272 = smul.addr %s271, 8
        %s273 = scalar_lea.vmem %s0, %s272
        %s274 = smul.u32 16, %s18
        %v276 = vld [vmem:[%s273] sm:$0xff]
        %v277 = vld [vmem:[%s273 + $0x8] sm:$0xff]
        %v278 = vld [vmem:[%s273 + $0x10] sm:$0xff]
        %v279 = vld [vmem:[%s273 + $0x18] sm:$0xff]
        %v280 = vld [vmem:[%s273 + $0x20] sm:$0xff]
        %v281 = vld [vmem:[%s273 + $0x28] sm:$0xff]
        %v282 = vld [vmem:[%s273 + $0x30] sm:$0xff]
        %v283 = vld [vmem:[%s273 + $0x38] sm:$0xff]
        %v284 = vld [vmem:[%s273 + $0x40] sm:$0xff]
        %v285 = vld [vmem:[%s273 + $0x48] sm:$0xff]
        %v286 = vld [vmem:[%s273 + $0x50] sm:$0xff]
        %v287 = vld [vmem:[%s273 + $0x58] sm:$0xff]
        %v288 = vld [vmem:[%s273 + $0x60] sm:$0xff]
        %v289 = vld [vmem:[%s273 + $0x68] sm:$0xff]
        %v290 = vld [vmem:[%s273 + $0x70] sm:$0xff]
        %v291 = vld [vmem:[%s273 + $0x78] sm:$0xff]
        %v292 = vpack.c.bf16 %v277, %v276
        %v293 = vpack.c.bf16 %v279, %v278
        %v294 = vpack.c.bf16 %v281, %v280
        %v295 = vpack.c.bf16 %v283, %v282
        %v296 = vpack.c.bf16 %v285, %v284
        %v297 = vpack.c.bf16 %v287, %v286
        %v298 = vpack.c.bf16 %v289, %v288
        %v299 = vpack.c.bf16 %v291, %v290
        %v300 = vld [vmem:[%s1] sm:$0xf]
        %v301 = vld [vmem:[%s1 + $0x4] sm:$0xf]
        %v302 = vld [vmem:[%s1 + $0x8] sm:$0xf]
        %v303 = vld [vmem:[%s1 + $0xc] sm:$0xf]
        %v304 = vld [vmem:[%s1 + $0x10] sm:$0xf]
        %v305 = vld [vmem:[%s1 + $0x14] sm:$0xf]
        %v306 = vld [vmem:[%s1 + $0x18] sm:$0xf]
        %v307 = vld [vmem:[%s1 + $0x1c] sm:$0xf]
        %v308 = vld [vmem:[%s1 + $0x20] sm:$0xf]
        %v309 = vld [vmem:[%s1 + $0x24] sm:$0xf]
        %v310 = vld [vmem:[%s1 + $0x28] sm:$0xf]
        %v311 = vld [vmem:[%s1 + $0x2c] sm:$0xf]
        %v312 = vld [vmem:[%s1 + $0x30] sm:$0xf]
        %v313 = vld [vmem:[%s1 + $0x34] sm:$0xf]
        %v314 = vld [vmem:[%s1 + $0x38] sm:$0xf]
        %v315 = vld [vmem:[%s1 + $0x3c] sm:$0xf]
        %v316 = vld [vmem:[%s2] sm:$0xff]
        %v317 = vld [vmem:[%s2 + $0x8] sm:$0xff]
        %v318 = vld [vmem:[%s2 + $0x10] sm:$0xff]
        %v319 = vld [vmem:[%s2 + $0x18] sm:$0xff]
        %v320 = vld [vmem:[%s2 + $0x20] sm:$0xff]
        %v321 = vld [vmem:[%s2 + $0x28] sm:$0xff]
        %v322 = vld [vmem:[%s2 + $0x30] sm:$0xff]
        %v323 = vld [vmem:[%s2 + $0x38] sm:$0xff]
        %v324 = vld [vmem:[%s2 + $0x40] sm:$0xff]
        %v325 = vld [vmem:[%s2 + $0x48] sm:$0xff]
        %v326 = vld [vmem:[%s2 + $0x50] sm:$0xff]
        %v327 = vld [vmem:[%s2 + $0x58] sm:$0xff]
        %v328 = vld [vmem:[%s2 + $0x60] sm:$0xff]
        %v329 = vld [vmem:[%s2 + $0x68] sm:$0xff]
        %v330 = vld [vmem:[%s2 + $0x70] sm:$0xff]
        %v331 = vld [vmem:[%s2 + $0x78] sm:$0xff]
        %333 = vset.pattern.permute.xlu0 0
        %334 = vperm.xlu0 %333, %v316
        %v335 = vpop.permute.xlu0 %334
        %338 = vset.pattern.permute.xlu0 0
        %339 = vperm.xlu0 %338, %v317
        %v340 = vpop.permute.xlu0 %339
        %343 = vset.pattern.permute.xlu0 0
        %344 = vperm.xlu0 %343, %v318
        %v345 = vpop.permute.xlu0 %344
        %348 = vset.pattern.permute.xlu0 0
        %349 = vperm.xlu0 %348, %v319
        %v350 = vpop.permute.xlu0 %349
        %353 = vset.pattern.permute.xlu0 0
        %354 = vperm.xlu0 %353, %v320
        %v355 = vpop.permute.xlu0 %354
        %358 = vset.pattern.permute.xlu0 0
        %359 = vperm.xlu0 %358, %v321
        %v360 = vpop.permute.xlu0 %359
        %363 = vset.pattern.permute.xlu0 0
        %364 = vperm.xlu0 %363, %v322
        %v365 = vpop.permute.xlu0 %364
        %368 = vset.pattern.permute.xlu0 0
        %369 = vperm.xlu0 %368, %v323
        %v370 = vpop.permute.xlu0 %369
        %373 = vset.pattern.permute.xlu0 0
        %374 = vperm.xlu0 %373, %v324
        %v375 = vpop.permute.xlu0 %374
        %378 = vset.pattern.permute.xlu0 0
        %379 = vperm.xlu0 %378, %v325
        %v380 = vpop.permute.xlu0 %379
        %383 = vset.pattern.permute.xlu0 0
        %384 = vperm.xlu0 %383, %v326
        %v385 = vpop.permute.xlu0 %384
        %388 = vset.pattern.permute.xlu0 0
        %389 = vperm.xlu0 %388, %v327
        %v390 = vpop.permute.xlu0 %389
        %393 = vset.pattern.permute.xlu0 0
        %394 = vperm.xlu0 %393, %v328
        %v395 = vpop.permute.xlu0 %394
        %398 = vset.pattern.permute.xlu0 0
        %399 = vperm.xlu0 %398, %v329
        %v400 = vpop.permute.xlu0 %399
        %403 = vset.pattern.permute.xlu0 0
        %404 = vperm.xlu0 %403, %v330
        %v405 = vpop.permute.xlu0 %404
        %408 = vset.pattern.permute.xlu0 0
        %409 = vperm.xlu0 %408, %v331
        %v410 = vpop.permute.xlu0 %409
        %v428 = vunpack.c.l.b16 %v300
        %v429 = vunpack.c.l.b16 %v301
        %v430 = vunpack.c.l.b16 %v302
        %v431 = vunpack.c.l.b16 %v303
        %v432 = vunpack.c.l.b16 %v304
        %v433 = vunpack.c.l.b16 %v305
        %v434 = vunpack.c.l.b16 %v306
        %v435 = vunpack.c.l.b16 %v307
        %v436 = vunpack.c.l.b16 %v308
        %v437 = vunpack.c.l.b16 %v309
        %v438 = vunpack.c.l.b16 %v310
        %v439 = vunpack.c.l.b16 %v311
        %v440 = vunpack.c.l.b16 %v312
        %v441 = vunpack.c.l.b16 %v313
        %v442 = vunpack.c.l.b16 %v314
        %v443 = vunpack.c.l.b16 %v315
        %v444 = vpack.c.b16 %v429, %v428
        %v445 = vpack.c.b16 %v431, %v430
        %v446 = vpack.c.b16 %v433, %v432
        %v447 = vpack.c.b16 %v435, %v434
        %v448 = vpack.c.b16 %v437, %v436
        %v449 = vpack.c.b16 %v439, %v438
        %v450 = vpack.c.b16 %v441, %v440
        %v451 = vpack.c.b16 %v443, %v442
        %vm452 = vcmask 261120
        %v454 = vsel %vm452, %v444, 0
        %v457 = vsel %vm452, %v445, 0
        %v460 = vsel %vm452, %v446, 0
        %v463 = vsel %vm452, %v447, 0
        %v466 = vsel %vm452, %v448, 0
        %v469 = vsel %vm452, %v449, 0
        %v472 = vsel %vm452, %v450, 0
        %v475 = vsel %vm452, %v451, 0
        %v478 = vsel %vm452, %v292, 0
        %v481 = vsel %vm452, %v293, 0
        %v484 = vsel %vm452, %v294, 0
        %v487 = vsel %vm452, %v295, 0
        %v490 = vsel %vm452, %v296, 0
        %v493 = vsel %vm452, %v297, 0
        %v496 = vsel %vm452, %v298, 0
        %v499 = vsel %vm452, %v299, 0
        %501 = vmatprep.subr.bf16.mxu0 0
        %502 = vmatpush1.bf16.xpose.msra.mxu0 %v478
        %503 = vmatprep.subr.bf16.mxu0 0
        %504 = vmatpush1.bf16.xpose.msra.mxu0 %v481
        %505 = vmatprep.subr.bf16.mxu0 0
        %506 = vmatpush1.bf16.xpose.msra.mxu0 %v484
        %507 = vmatprep.subr.bf16.mxu0 0
        %508 = vmatpush1.bf16.xpose.msra.mxu0 %v487
        %509 = vmatprep.subr.bf16.mxu0 0
        %510 = vmatpush1.bf16.xpose.msra.mxu0 %v490
        %511 = vmatprep.subr.bf16.mxu0 0
        %512 = vmatpush1.bf16.xpose.msra.mxu0 %v493
        %513 = vmatprep.subr.bf16.mxu0 0
        %514 = vmatpush1.bf16.xpose.msra.mxu0 %v496
        %515 = vmatprep.subr.bf16.mxu0 0
        %516 = vmatpush1.bf16.xpose.msra.mxu0 %v499
        %517 = vmatprep.subr.bf16.mxu0 0
        %518 = vmatpush1.bf16.xpose.msra.mxu0 0
        %519 = vmatprep.subr.bf16.mxu0 0
        %520 = vmatpush1.bf16.xpose.msra.mxu0 0
        %521 = vmatprep.subr.bf16.mxu0 0
        %522 = vmatpush1.bf16.xpose.msra.mxu0 0
        %523 = vmatprep.subr.bf16.mxu0 0
        %524 = vmatpush1.bf16.xpose.msra.mxu0 0
        %525 = vmatprep.subr.bf16.mxu0 0
        %526 = vmatpush1.bf16.xpose.msra.mxu0 0
        %527 = vmatprep.subr.bf16.mxu0 0
        %528 = vmatpush1.bf16.xpose.msra.mxu0 0
        %529 = vmatprep.subr.bf16.mxu0 0
        %530 = vmatpush1.bf16.xpose.msra.mxu0 0
        %531 = vmatprep.subr.bf16.mxu0 0
        %532 = vmatpush1.bf16.xpose.msra.mxu0 0
        %533 = vmatprep.mubr.bf16.mxu0 0
        %534 = vmatmul.mubr.bf16.gmra.mrb[0].mxu0 %v454
        %v535 = vpop.f32.mrb[0].mxu0
        %v536 = vadd.f32 %v335, %v535
        %v537 = vpop.f32.mrb[0].mxu0
        %v538 = vpop.f32.mrb[0].mxu0
        %v539 = vadd.f32 %v340, %v538
        %v540 = vpop.f32.mrb[0].mxu0
        %541 = vmatprep.mubr.bf16.mxu0 0
        %542 = vmatmul.mubr.bf16.gmra.mrb[0].mxu0 %v457
        %v543 = vpop.f32.mrb[0].mxu0
        %v544 = vadd.f32 %v345, %v543
        %v545 = vpop.f32.mrb[0].mxu0
        %v546 = vpop.f32.mrb[0].mxu0
        %v547 = vadd.f32 %v350, %v546
        %v548 = vpop.f32.mrb[0].mxu0
        %549 = vmatprep.mubr.bf16.mxu0 0
        %550 = vmatmul.mubr.bf16.gmra.mrb[0].mxu0 %v460
        %v551 = vpop.f32.mrb[0].mxu0
        %v552 = vadd.f32 %v355, %v551
        %v553 = vpop.f32.mrb[0].mxu0
        %v554 = vpop.f32.mrb[0].mxu0
        %v555 = vadd.f32 %v360, %v554
        %v556 = vpop.f32.mrb[0].mxu0
        %557 = vmatprep.mubr.bf16.mxu0 0
        %558 = vmatmul.mubr.bf16.gmra.mrb[0].mxu0 %v463
        %v559 = vpop.f32.mrb[0].mxu0
        %v560 = vadd.f32 %v365, %v559
        %v561 = vpop.f32.mrb[0].mxu0
        %v562 = vpop.f32.mrb[0].mxu0
        %v563 = vadd.f32 %v370, %v562
        %v564 = vpop.f32.mrb[0].mxu0
        %565 = vmatprep.mubr.bf16.mxu0 0
        %566 = vmatmul.mubr.bf16.gmra.mrb[0].mxu0 %v466
        %v567 = vpop.f32.mrb[0].mxu0
        %v568 = vadd.f32 %v375, %v567
        %v569 = vpop.f32.mrb[0].mxu0
        %v570 = vpop.f32.mrb[0].mxu0
        %v571 = vadd.f32 %v380, %v570
        %v572 = vpop.f32.mrb[0].mxu0
        %573 = vmatprep.mubr.bf16.mxu0 0
        %574 = vmatmul.mubr.bf16.gmra.mrb[0].mxu0 %v469
        %v575 = vpop.f32.mrb[0].mxu0
        %v576 = vadd.f32 %v385, %v575
        %v577 = vpop.f32.mrb[0].mxu0
        %v578 = vpop.f32.mrb[0].mxu0
        %v579 = vadd.f32 %v390, %v578
        %v580 = vpop.f32.mrb[0].mxu0
        %581 = vmatprep.mubr.bf16.mxu0 0
        %582 = vmatmul.mubr.bf16.gmra.mrb[0].mxu0 %v472
        %v583 = vpop.f32.mrb[0].mxu0
        %v584 = vadd.f32 %v395, %v583
        %v585 = vpop.f32.mrb[0].mxu0
        %v586 = vpop.f32.mrb[0].mxu0
        %v587 = vadd.f32 %v400, %v586
        %v588 = vpop.f32.mrb[0].mxu0
        %589 = vmatprep.mubr.bf16.mxu0 0
        %590 = vmatmul.mubr.bf16.gmra.mrb[0].mxu0 %v475
        %v591 = vpop.f32.mrb[0].mxu0
        %v592 = vadd.f32 %v405, %v591
        %v593 = vpop.f32.mrb[0].mxu0
        %v594 = vpop.f32.mrb[0].mxu0
        %v595 = vadd.f32 %v410, %v594
        %v596 = vpop.f32.mrb[0].mxu0
        %597 = vdwg.mxu0
        %v598 = vmax.f32 %v536, 0.0
        %v599 = vmax.f32 %v539, 0.0
        %v600 = vmax.f32 %v544, 0.0
        %v601 = vmax.f32 %v547, 0.0
        %v602 = vmax.f32 %v552, 0.0
        %v603 = vmax.f32 %v555, 0.0
        %v604 = vmax.f32 %v560, 0.0
        %v605 = vmax.f32 %v563, 0.0
        %v606 = vmax.f32 %v568, 0.0
        %v607 = vmax.f32 %v571, 0.0
        %v608 = vmax.f32 %v576, 0.0
        %v609 = vmax.f32 %v579, 0.0
        %v610 = vmax.f32 %v584, 0.0
        %v611 = vmax.f32 %v587, 0.0
        %v612 = vmax.f32 %v592, 0.0
        %v613 = vmax.f32 %v595, 0.0
        %v614 = vpack.c.bf16 %v599, %v598
        %v615 = vpack.c.bf16 %v601, %v600
        %v616 = vpack.c.bf16 %v603, %v602
        %v617 = vpack.c.bf16 %v605, %v604
        %v618 = vpack.c.bf16 %v607, %v606
        %v619 = vpack.c.bf16 %v609, %v608
        %v620 = vpack.c.bf16 %v611, %v610
        %v621 = vpack.c.bf16 %v613, %v612
        %v622 = vld [vmem:[%s3] sm:$0xf]
        %v623 = vld [vmem:[%s3 + $0x4] sm:$0xf]
        %v624 = vld [vmem:[%s3 + $0x8] sm:$0xf]
        %v625 = vld [vmem:[%s3 + $0xc] sm:$0xf]
        %v626 = vld [vmem:[%s3 + $0x10] sm:$0xf]
        %v627 = vld [vmem:[%s3 + $0x14] sm:$0xf]
        %v628 = vld [vmem:[%s3 + $0x18] sm:$0xf]
        %v629 = vld [vmem:[%s3 + $0x1c] sm:$0xf]
        %v630 = vld [vmem:[%s4] sm:$0xff]
        %v631 = vld [vmem:[%s4 + $0x8] sm:$0xff]
        %v632 = vld [vmem:[%s4 + $0x10] sm:$0xff]
        %v633 = vld [vmem:[%s4 + $0x18] sm:$0xff]
        %v634 = vld [vmem:[%s4 + $0x20] sm:$0xff]
        %v635 = vld [vmem:[%s4 + $0x28] sm:$0xff]
        %v636 = vld [vmem:[%s4 + $0x30] sm:$0xff]
        %v637 = vld [vmem:[%s4 + $0x38] sm:$0xff]
        %639 = vset.pattern.permute.xlu0 0
        %640 = vperm.xlu0 %639, %v630
        %v641 = vpop.permute.xlu0 %640
        %644 = vset.pattern.permute.xlu0 0
        %645 = vperm.xlu0 %644, %v631
        %v646 = vpop.permute.xlu0 %645
        %649 = vset.pattern.permute.xlu0 0
        %650 = vperm.xlu0 %649, %v632
        %v651 = vpop.permute.xlu0 %650
        %654 = vset.pattern.permute.xlu0 0
        %655 = vperm.xlu0 %654, %v633
        %v656 = vpop.permute.xlu0 %655
        %659 = vset.pattern.permute.xlu0 0
        %660 = vperm.xlu0 %659, %v634
        %v661 = vpop.permute.xlu0 %660
        %664 = vset.pattern.permute.xlu0 0
        %665 = vperm.xlu0 %664, %v635
        %v666 = vpop.permute.xlu0 %665
        %669 = vset.pattern.permute.xlu0 0
        %670 = vperm.xlu0 %669, %v636
        %v671 = vpop.permute.xlu0 %670
        %674 = vset.pattern.permute.xlu0 0
        %675 = vperm.xlu0 %674, %v637
        %v676 = vpop.permute.xlu0 %675
        %v686 = vunpack.c.l.b16 %v622
        %v687 = vunpack.c.l.b16 %v623
        %v688 = vunpack.c.l.b16 %v624
        %v689 = vunpack.c.l.b16 %v625
        %v690 = vunpack.c.l.b16 %v626
        %v691 = vunpack.c.l.b16 %v627
        %v692 = vunpack.c.l.b16 %v628
        %v693 = vunpack.c.l.b16 %v629
        %v694 = vpack.c.b16 %v687, %v686
        %v695 = vpack.c.b16 %v689, %v688
        %v696 = vpack.c.b16 %v691, %v690
        %v697 = vpack.c.b16 %v693, %v692
        %702 = vmatprep.subr.bf16.mxu0 0
        %703 = vmatpush1.bf16.msra.mxu0 %v614
        %704 = vmatprep.subr.bf16.mxu0 0
        %705 = vmatpush1.bf16.msra.mxu0 %v615
        %706 = vmatprep.subr.bf16.mxu0 0
        %707 = vmatpush1.bf16.msra.mxu0 %v616
        %708 = vmatprep.subr.bf16.mxu0 0
        %709 = vmatpush1.bf16.msra.mxu0 %v617
        %710 = vmatprep.subr.bf16.mxu0 0
        %711 = vmatpush1.bf16.msra.mxu0 %v618
        %712 = vmatprep.subr.bf16.mxu0 0
        %713 = vmatpush1.bf16.msra.mxu0 %v619
        %714 = vmatprep.subr.bf16.mxu0 0
        %715 = vmatpush1.bf16.msra.mxu0 %v620
        %716 = vmatprep.subr.bf16.mxu0 0
        %717 = vmatpush1.bf16.msra.mxu0 %v621
        %718 = vmatprep.subr.bf16.mxu0 0
        %719 = vmatpush1.bf16.msra.mxu0 0
        %720 = vmatprep.subr.bf16.mxu0 0
        %721 = vmatpush1.bf16.msra.mxu0 0
        %722 = vmatprep.subr.bf16.mxu0 0
        %723 = vmatpush1.bf16.msra.mxu0 0
        %724 = vmatprep.subr.bf16.mxu0 0
        %725 = vmatpush1.bf16.msra.mxu0 0
        %726 = vmatprep.subr.bf16.mxu0 0
        %727 = vmatpush1.bf16.msra.mxu0 0
        %728 = vmatprep.subr.bf16.mxu0 0
        %729 = vmatpush1.bf16.msra.mxu0 0
        %730 = vmatprep.subr.bf16.mxu0 0
        %731 = vmatpush1.bf16.msra.mxu0 0
        %732 = vmatprep.subr.bf16.mxu0 0
        %733 = vmatpush1.bf16.msra.mxu0 0
        %734 = vmatprep.mubr.bf16.mxu0 0
        %735 = vmatmul.mubr.bf16.gmra.mrb[0].mxu0 %v694
        %v736 = vpop.f32.mrb[0].mxu0
        %v737 = vadd.f32 %v641, %v736
        %v738 = vpop.f32.mrb[0].mxu0
        %v739 = vpop.f32.mrb[0].mxu0
        %v740 = vadd.f32 %v646, %v739
        %v741 = vpop.f32.mrb[0].mxu0
        %742 = vmatprep.mubr.bf16.mxu0 0
        %743 = vmatmul.mubr.bf16.gmra.mrb[0].mxu0 %v695
        %v744 = vpop.f32.mrb[0].mxu0
        %v745 = vadd.f32 %v651, %v744
        %v746 = vpop.f32.mrb[0].mxu0
        %v747 = vpop.f32.mrb[0].mxu0
        %v748 = vadd.f32 %v656, %v747
        %v749 = vpop.f32.mrb[0].mxu0
        %750 = vmatprep.mubr.bf16.mxu0 0
        %751 = vmatmul.mubr.bf16.gmra.mrb[0].mxu0 %v696
        %v752 = vpop.f32.mrb[0].mxu0
        %v753 = vadd.f32 %v661, %v752
        %v754 = vpop.f32.mrb[0].mxu0
        %v755 = vpop.f32.mrb[0].mxu0
        %v756 = vadd.f32 %v666, %v755
        %v757 = vpop.f32.mrb[0].mxu0
        %758 = vmatprep.mubr.bf16.mxu0 0
        %759 = vmatmul.mubr.bf16.gmra.mrb[0].mxu0 %v697
        %v760 = vpop.f32.mrb[0].mxu0
        %v761 = vadd.f32 %v671, %v760
        %v762 = vpop.f32.mrb[0].mxu0
        %v763 = vpop.f32.mrb[0].mxu0
        %v764 = vadd.f32 %v676, %v763
        %v765 = vpop.f32.mrb[0].mxu0
        %766 = vdwg.mxu0
        %v767 = vmax.f32 %v737, 0.0
        %v768 = vmax.f32 %v740, 0.0
        %v769 = vmax.f32 %v745, 0.0
        %v770 = vmax.f32 %v748, 0.0
        %v771 = vmax.f32 %v753, 0.0
        %v772 = vmax.f32 %v756, 0.0
        %v773 = vmax.f32 %v761, 0.0
        %v774 = vmax.f32 %v764, 0.0
        %v775 = vpack.c.bf16 %v768, %v767
        %v776 = vpack.c.bf16 %v770, %v769
        %v777 = vpack.c.bf16 %v772, %v771
        %v778 = vpack.c.bf16 %v774, %v773
        %v779 = vld [vmem:[%s5] sm:$0xf]
        %v780 = vld [vmem:[%s5 + $0x4] sm:$0xf]
        %v781 = vld [vmem:[%s6] sm:$0xff]
        %v782 = vld [vmem:[%s6 + $0x8] sm:$0xff]
        %784 = vset.pattern.permute.xlu0 0
        %785 = vperm.xlu0 %784, %v781
        %v786 = vpop.permute.xlu0 %785
        %789 = vset.pattern.permute.xlu0 0
        %790 = vperm.xlu0 %789, %v782
        %v791 = vpop.permute.xlu0 %790
        %v795 = vunpack.c.l.b16 %v779
        %v796 = vunpack.c.l.b16 %v780
        %v797 = vpack.c.b16 %v796, %v795
        %vm798 = vcmask 523264
        %v800 = vsel %vm798, %v797, 0
        %802 = vmatprep.subr.bf16.mxu0 0
        %803 = vmatpush1.bf16.msra.mxu0 %v775
        %804 = vmatprep.subr.bf16.mxu0 0
        %805 = vmatpush1.bf16.msra.mxu0 %v776
        %806 = vmatprep.subr.bf16.mxu0 0
        %807 = vmatpush1.bf16.msra.mxu0 %v777
        %808 = vmatprep.subr.bf16.mxu0 0
        %809 = vmatpush1.bf16.msra.mxu0 %v778
        %810 = vmatprep.subr.bf16.mxu0 0
        %811 = vmatpush1.bf16.msra.mxu0 0
        %812 = vmatprep.subr.bf16.mxu0 0
        %813 = vmatpush1.bf16.msra.mxu0 0
        %814 = vmatprep.subr.bf16.mxu0 0
        %815 = vmatpush1.bf16.msra.mxu0 0
        %816 = vmatprep.subr.bf16.mxu0 0
        %817 = vmatpush1.bf16.msra.mxu0 0
        %818 = vmatprep.subr.bf16.mxu0 0
        %819 = vmatpush1.bf16.msra.mxu0 0
        %820 = vmatprep.subr.bf16.mxu0 0
        %821 = vmatpush1.bf16.msra.mxu0 0
        %822 = vmatprep.subr.bf16.mxu0 0
        %823 = vmatpush1.bf16.msra.mxu0 0
        %824 = vmatprep.subr.bf16.mxu0 0
        %825 = vmatpush1.bf16.msra.mxu0 0
        %826 = vmatprep.subr.bf16.mxu0 0
        %827 = vmatpush1.bf16.msra.mxu0 0
        %828 = vmatprep.subr.bf16.mxu0 0
        %829 = vmatpush1.bf16.msra.mxu0 0
        %830 = vmatprep.subr.bf16.mxu0 0
        %831 = vmatpush1.bf16.msra.mxu0 0
        %832 = vmatprep.subr.bf16.mxu0 0
        %833 = vmatpush1.bf16.msra.mxu0 0
        %834 = vmatprep.mubr.bf16.mxu0 0
        %835 = vmatmul.mubr.bf16.gmra.mrb[0].mxu0 %v800
        %v836 = vpop.f32.mrb[0].mxu0
        %v837 = vadd.f32 %v786, %v836
        %v838 = vpop.f32.mrb[0].mxu0
        %v839 = vpop.f32.mrb[0].mxu0
        %v840 = vadd.f32 %v791, %v839
        %v841 = vpop.f32.mrb[0].mxu0
        %842 = vdwg.mxu0
        %v843 = vpack.c.bf16 %v840, %v837
        %v845 = vunpack.c.l.b16 %v843
        %v846 = vunpack.c.h.b16 %v843
        %v847 = vpack.c.b16 %v845, %v845
        %v848 = vpack.c.b16 %v846, %v846
        %851 = vst [vmem:[%s268] sm:$0xf] %v847
        %852 = vst [vmem:[%s268 + $0x4] sm:$0xf] %v848
        %s853 = sand.u32 %s178, 1
        %s854 = sand.u32 %s178, 1
        %s855 = smul.addr %s854, 8
        %s856 = scalar_lea.vmem [#allocation2], %s855
        // Predicated region
        $region49: #{sequence_mlp.1} parent=47 // pred_check
          %p857 = pneg %p188
        $region50: #{sequence_mlp.1} parent=47 // pred_check_branch
          %859 = sbr.rel (%p857) target = $region52
        $region51: #{sequence_mlp.1} parent=47 // pred_region
          %s860 = smul.addr %s18, 4
          %s861 = scalar_lea.vmem %s7, %s860
          // Predicated region
          $region53: #{sequence_mlp.1} parent=51 // pred_check
            _
          $region54: #{sequence_mlp.1} parent=51 // pred_check_branch
            %863 = sbr.rel (0) target = $region56
          $region55: #{sequence_mlp.1} parent=51 // pred_region
            // Predicated region
            $region57: #{sequence_mlp.1} parent=55 // pred_check
              _
            $region58: #{sequence_mlp.1} parent=55 // pred_check_branch
              %865 = sbr.rel target = $region60
            $region59: #{sequence_mlp.1} parent=55 // pred_region
              // Predicated region
              $region72: #{sequence_mlp.1} parent=59 // pred_check
                _
              $region73: #{sequence_mlp.1} parent=59 // pred_check_branch
                %882 = sbr.rel (0) target = $region75
              $region74: #{sequence_mlp.1} parent=59 // pred_region
                loop: start=0, step=1, limit=1
                $region76: #{sequence_mlp.1} parent=74 // loop_pre_header
                  _
                $region77: #{sequence_mlp.1} parent=74 // loop_header
                  %s884 = sphi 0, %s888
                  %p885 = scmp.ge.s32.totalorder %s884, 1
                  %s889 = sphi %s856, %s856
                  %s890 = sphi %s861, %s861
                $region78: #{sequence_mlp.1} parent=74 // loop_header_branch
                  %887 = sbr.rel (%p885) target = $region82
                $region79: #{sequence_mlp.1} parent=74 // loop_body
                  _
                $region80: #{sequence_mlp.1} parent=74 // loop_footer
                  %s888 = sadd.s32 1, %s884
                $region81: #{sequence_mlp.1} parent=74 // loop_footer_branch
                  %883 = sbr.rel target = $region77
                $region82: #{sequence_mlp.1} parent=74 // loop_exit
                  _
                loop: start=0, step=1, limit=1
                $region83: #{sequence_mlp.1} parent=74 // loop_pre_header
                  _
                $region84: #{sequence_mlp.1} parent=74 // loop_header
                  %s893 = sphi 0, %s897
                  %p894 = scmp.ge.s32.totalorder %s893, 1
                  %s898 = sphi %s856, %s856
                  %s899 = sphi %s861, %s861
                $region85: #{sequence_mlp.1} parent=74 // loop_header_branch
                  %896 = sbr.rel (%p894) target = $region89
                $region86: #{sequence_mlp.1} parent=74 // loop_body
                  %v900 = vld [vmem:[%s898] sm:$0xf]
                  %901 = vst [vmem:[%s899] sm:$0xf] %v900
                  %v902 = vld [vmem:[%s898 + $0x4] sm:$0xf]
                  %903 = vst [vmem:[%s899 + $0x8] sm:$0xf] %v902
                $region87: #{sequence_mlp.1} parent=74 // loop_footer
                  %s897 = sadd.s32 1, %s893
                $region88: #{sequence_mlp.1} parent=74 // loop_footer_branch
                  %892 = sbr.rel target = $region84
                $region89: #{sequence_mlp.1} parent=74 // loop_exit
                  _
              $region75: #{sequence_mlp.1} parent=59 // pred_fallthru
                _
            $region60: #{sequence_mlp.1} parent=55 // pred_fallthru
              _
            // Predicated region
            $region61: #{sequence_mlp.1} parent=55 // pred_check
              _
            $region62: #{sequence_mlp.1} parent=55 // pred_check_branch
              %867 = sbr.rel (0) target = $region64
            $region63: #{sequence_mlp.1} parent=55 // pred_region
              loop: start=0, step=1, limit=1
              $region65: #{sequence_mlp.1} parent=63 // loop_pre_header
                _
              $region66: #{sequence_mlp.1} parent=63 // loop_header
                %s870 = sphi 0, %s874
                %p871 = scmp.ge.s32.totalorder %s870, 1
                %s875 = sphi %s856, %s856
                %s876 = sphi %s861, %s861
              $region67: #{sequence_mlp.1} parent=63 // loop_header_branch
                %873 = sbr.rel (%p871) target = $region71
              $region68: #{sequence_mlp.1} parent=63 // loop_body
                %v877 = vld [vmem:[%s875] sm:$0xf]
                %878 = vst [vmem:[%s876] sm:$0xf] %v877
                %v879 = vld [vmem:[%s875 + $0x4] sm:$0xf]
                %880 = vst [vmem:[%s876 + $0x8] sm:$0xf] %v879
              $region69: #{sequence_mlp.1} parent=63 // loop_footer
                %s874 = sadd.s32 1, %s870
              $region70: #{sequence_mlp.1} parent=63 // loop_footer_branch
                %869 = sbr.rel target = $region66
              $region71: #{sequence_mlp.1} parent=63 // loop_exit
                _
            $region64: #{sequence_mlp.1} parent=55 // pred_fallthru
              _
          $region56: #{sequence_mlp.1} parent=51 // pred_fallthru
            _
          %904 = vnop
        $region52: #{sequence_mlp.1} parent=47 // pred_fallthru
          _
      $region48: #{sequence_mlp.1} parent=5 // pred_fallthru
        _
      %p905 = scmp.le.s32.totalorder 2, %s13
      // Predicated region
      $region90: #{sequence_mlp.1} parent=5 // pred_check
        %p906 = pneg %p905
      $region91: #{sequence_mlp.1} parent=5 // pred_check_branch
        %908 = sbr.rel (%p906) target = $region93
      $region92: #{sequence_mlp.1} parent=5 // pred_region
        %s909 = ssub.s32 %s13, 2
        // Predicated region
        $region94: #{sequence_mlp.1} parent=92 // pred_check
          %p910 = pneg %p194
        $region95: #{sequence_mlp.1} parent=92 // pred_check_branch
          %912 = sbr.rel (%p910) target = $region97
        $region96: #{sequence_mlp.1} parent=92 // pred_region
          %s913 = sand.u32 %s179, 1
          %s914 = sand.u32 %s179, 1
          %s915 = smul.addr %s914, 8
          %s916 = scalar_lea.vmem [#allocation2], %s915
        $region97: #{sequence_mlp.1} parent=92 // pred_fallthru
          _
      $region93: #{sequence_mlp.1} parent=5 // pred_fallthru
        _
    $region6: #{sequence_mlp.1} parent=1 // loop_footer
      %s17 = sadd.s32 1, %s13
    $region7: #{sequence_mlp.1} parent=1 // loop_footer_branch
      %12 = sbr.rel target = $region3
    $region8: #{sequence_mlp.1} parent=1 // loop_exit
      _

</llo_original>
